<compile_context>
chip_gen: v5e
topology: v5e:2x2
jax: 0.10.0
libtpu: 0.0.40
codegen_flags: <defaults>
</compile_context>

<pallas_src>
import jax
import jax.numpy as jnp
from jax import lax
from jax.experimental import pallas as pl
from jax.experimental.pallas import tpu as pltpu


def _ceil_to(x, m):
    return -(-x // m) * m


def _dwsep_gemm_kernel(x_ref, w_ref, b_ref, o_ref):
    """One batch-block per grid step.

    x_ref : (nb, K*K*C, H*W)  lane-dense im2col'd activations
    w_ref : (Cout, K*K*C)     folded depthwise+pointwise weights (VMEM resident)
    b_ref : (Cout, 1)         folded bias  wp @ bd + bp          (VMEM resident)
    o_ref : (nb, Cout, H*W)   lane-dense output
    """
    w = w_ref[...]
    b = b_ref[...]
    for i in range(x_ref.shape[0]):           # static unroll over the batch block
        acc = jnp.dot(
            w, x_ref[i],
            preferred_element_type=jnp.float32,
            precision=lax.Precision.HIGHEST,
        )
        o_ref[i] = (acc + b).astype(o_ref.dtype)


def depthwise_separable_conv(x, w_depth, b_depth, w_point, b_point, dilation,
                             *, batch_block=None):
    """x       : (N, C, H, W) float32
    w_depth : (C, 1, K, K)   PyTorch depthwise Conv2d weight (groups=C)
    b_depth : (C,)
    w_point : (Cout, C, 1, 1)
    b_point : (Cout,)
    returns : (N, Cout, H, W)   (padding=dilation keeps spatial size)
    """
    N, C, H, W = x.shape
    Cout = w_point.shape[0]
    K = w_depth.shape[-1]
    d = int(dilation)
    HW = H * W
    CKK = C * K * K

    # ---- Lane-dense im2col in one fused XLA op (halo padding included, so no
    #      separate jnp.pad pass).  Feature ordering is channel-major then
    #      filter-spatial (row-major):
    #        patches[n, c*K*K + kh*K + kw, y, x] = x_pad[n, c, y + kh*d, x + kw*d]
    patches = lax.conv_general_dilated_patches(
        x,
        filter_shape=(K, K),
        window_strides=(1, 1),
        padding=[(d, d), (d, d)],
        rhs_dilation=(d, d),
        dimension_numbers=("NCHW", "OIHW", "NCHW"),
        precision=lax.Precision.HIGHEST,
    )                                              # (N, C*K*K, H, W)
    patches = patches.reshape(N, CKK, HW)          # free row-major reshape

    # ---- Fold depthwise taps into the pointwise weights (matching the patches
    #      feature ordering) and fold both biases together.
    wd = w_depth[:, 0, :, :].reshape(C, K * K)                     # (C, K*K)
    wp = w_point[:, :, 0, 0]                                       # (Cout, C)
    # w2[o, c*K*K + s] = wp[o, c] * wd[c, s]
    w2 = (wp[:, :, None] * wd[None, :, :]).reshape(Cout, CKK)
    w2 = w2.astype(jnp.float32)                                    # (Cout, C*K*K)
    bias = (wp @ b_depth + b_point).reshape(Cout, 1).astype(jnp.float32)

    # ---- Batch blocking: amortize per-grid-step overhead, but keep >= 2
    #      "parallel" grid steps when possible so both v7x TensorCores get work.
    lane_hw = _ceil_to(HW, 128)
    per_batch_bytes = 2 * (_ceil_to(CKK, 8) + _ceil_to(Cout, 8)) * lane_hw * 4
    if batch_block is None:
        nb = N if N < 2 else N // 2
        nb = max(1, min(nb, (8 << 20) // max(per_batch_bytes, 1)))
    else:
        nb = max(1, min(int(batch_block), N))
    while N % nb:
        nb -= 1
    grid = (N // nb,)

    # ---- VMEM budget from the actual (lane/sublane padded) block sizes,
    #      double-buffered, plus headroom (re-derived rather than a flat 32 MiB
    #      so the same code scales onto v7x's 64 MiB VMEM).
    x_blk = nb * _ceil_to(CKK, 8) * lane_hw * 4
    o_blk = nb * _ceil_to(Cout, 8) * lane_hw * 4
    w_blk = _ceil_to(Cout, 8) * _ceil_to(CKK, 128) * 4
    b_blk = _ceil_to(Cout, 8) * 128 * 4
    vmem_bytes = 2 * (x_blk + o_blk + w_blk + b_blk) + (4 << 20)
    vmem_bytes = int(min(max(vmem_bytes, 4 << 20), 96 << 20))

    out_flat = pl.pallas_call(
        _dwsep_gemm_kernel,
        out_shape=jax.ShapeDtypeStruct((N, Cout, HW), jnp.float32),
        grid=grid,
        in_specs=[
            pl.BlockSpec((nb, CKK, HW), lambda g: (g, 0, 0)),
            pl.BlockSpec((Cout, CKK), lambda g: (0, 0)),   # resident across steps
            pl.BlockSpec((Cout, 1), lambda g: (0, 0)),     # resident across steps
        ],
        out_specs=pl.BlockSpec((nb, Cout, HW), lambda g: (g, 0, 0)),
        compiler_params=pltpu.CompilerParams(
            dimension_semantics=("parallel",),
            vmem_limit_bytes=vmem_bytes,
        ),
    )(patches, w2, bias)

    # Pure reshape (row-major flat spatial == NCHW), no transpose needed.
    return out_flat.reshape(N, Cout, H, W)


def _reference(x, w_depth, b_depth, w_point, b_point, dilation):
    """Plain-JAX reference matching nn.Conv2d semantics (NCHW)."""
    C = x.shape[1]
    d = dilation
    y = lax.conv_general_dilated(
        x, w_depth,
        window_strides=(1, 1),
        padding=[(d, d), (d, d)],
        rhs_dilation=(d, d),
        feature_group_count=C,
        dimension_numbers=("NCHW", "OIHW", "NCHW"),
        precision=lax.Precision.HIGHEST,
    ) + b_depth.reshape(1, -1, 1, 1)
    z = lax.conv_general_dilated(
        y, w_point,
        window_strides=(1, 1),
        padding=[(0, 0), (0, 0)],
        dimension_numbers=("NCHW", "OIHW", "NCHW"),
        precision=lax.Precision.HIGHEST,
    ) + b_point.reshape(1, -1, 1, 1)
    return z


if __name__ == "__main__":
    # Small deterministic config.
    N, C_in, C_out, H, W = 2, 4, 8, 16, 16
    dilation = 2
    K = 3

    key = jax.random.PRNGKey(0)
    k_x, k_wd, k_bd, k_wp, k_bp = jax.random.split(key, 5)

    x = jax.random.normal(k_x, (N, C_in, H, W), jnp.float32)
    # Parameter shapes mirror the nn.Module's __init__ (deterministic synthetic init).
    w_depth = jax.random.normal(k_wd, (C_in, 1, K, K), jnp.float32) * 0.1
    b_depth = jax.random.normal(k_bd, (C_in,), jnp.float32) * 0.1
    w_point = jax.random.normal(k_wp, (C_out, C_in, 1, 1), jnp.float32) * 0.1
    b_point = jax.random.normal(k_bp, (C_out,), jnp.float32) * 0.1

    out = depthwise_separable_conv(x, w_depth, b_depth, w_point, b_point, dilation)
    out = jax.block_until_ready(out)

    ref = _reference(x, w_depth, b_depth, w_point, b_point, dilation)
    assert out.shape == (N, C_out, H, W), out.shape
    assert jnp.allclose(out, ref, atol=1e-4, rtol=1e-4), "mismatch vs reference"

    print("KERNEL_OK")
</pallas_src>

<mosaic_0001>
module attributes {stable_mosaic.version = 11 : i64} {
  func.func @_dwsep_gemm_kernel(%arg0: i32, %arg1: memref<1x36x256xf32, #tpu.memory_space<vmem>>, %arg2: memref<8x36xf32, #tpu.memory_space<vmem>>, %arg3: memref<8x1xf32, #tpu.memory_space<vmem>>, %arg4: memref<1x8x256xf32, #tpu.memory_space<vmem>>) attributes {dimension_semantics = [#tpu.dimension_semantics<parallel>], iteration_bounds = array<i64: 2>, scalar_prefetch = 0 : i64, scratch_operands = 0 : i64, tpu.core_type = #tpu.core_type<tc>, window_params = [{transform_indices = @transform_0, window_bounds = array<i64: 1, 36, 256>}, {pipeline_mode = #tpu.pipeline_mode<synchronous>, transform_indices = @transform_1, window_bounds = array<i64: 8, 36>}, {pipeline_mode = #tpu.pipeline_mode<synchronous>, transform_indices = @transform_2, window_bounds = array<i64: 8, 1>}, {transform_indices = @transform_3, window_bounds = array<i64: 1, 8, 256>}]} {
    %c0 = arith.constant 0 : index
    %c0_0 = arith.constant 0 : index
    %0 = vector.load %arg2[%c0, %c0_0] : memref<8x36xf32, #tpu.memory_space<vmem>>, vector<8x36xf32>
    %c0_1 = arith.constant 0 : index
    %c0_2 = arith.constant 0 : index
    %1 = vector.load %arg3[%c0_1, %c0_2] : memref<8x1xf32, #tpu.memory_space<vmem>>, vector<8x1xf32>
    %c0_3 = arith.constant 0 : index
    %c0_4 = arith.constant 0 : index
    %c0_5 = arith.constant 0 : index
    %2 = vector.load %arg1[%c0_3, %c0_4, %c0_5] : memref<1x36x256xf32, #tpu.memory_space<vmem>>, vector<1x36x256xf32>
    %3 = vector.shape_cast %2 : vector<1x36x256xf32> to vector<36x256xf32>
    %cst = arith.constant dense<0.000000e+00> : vector<8x256xf32>
    %4 = tpu.matmul %0, %3, %cst {dimension_numbers = #tpu.dot_dimension_numbers<[1], [0], [0], [1], [0, 0, 1, 1], [], []>, precision = #tpu.contract_precision<fp32>} : vector<8x36xf32>, vector<36x256xf32>, vector<8x256xf32> -> vector<8x256xf32>
    %5 = vector.broadcast %1 : vector<8x1xf32> to vector<8x256xf32>
    %6 = arith.addf %4, %5 : vector<8x256xf32>
    %c0_6 = arith.constant 0 : index
    %c0_7 = arith.constant 0 : index
    %c0_8 = arith.constant 0 : index
    %7 = vector.load %arg4[%c0_6, %c0_7, %c0_8] : memref<1x8x256xf32, #tpu.memory_space<vmem>>, vector<1x8x256xf32>
    %8 = vector.shape_cast %7 : vector<1x8x256xf32> to vector<8x256xf32>
    %9 = vector.shape_cast %6 : vector<8x256xf32> to vector<1x8x256xf32>
    tpu.vector_store %arg4[%c0_6, %c0_7, %c0_8], %9 {strides = array<i32>} : memref<1x8x256xf32, #tpu.memory_space<vmem>>, vector<1x8x256xf32>,
    return
  }
  func.func @transform_0(%arg0: i32) -> (i32, i32, i32) {
    %c0_i32 = arith.constant 0 : i32
    %c0_i32_0 = arith.constant 0 : i32
    %c0_i32_1 = arith.constant 0 : i32
    return %arg0, %c0_i32, %c0_i32_0 : i32, i32, i32
  }
  func.func @transform_1(%arg0: i32) -> (i32, i32) {
    %c0_i32 = arith.constant 0 : i32
    %c0_i32_0 = arith.constant 0 : i32
    %c0_i32_1 = arith.constant 0 : i32
    return %c0_i32, %c0_i32_0 : i32, i32
  }
  func.func @transform_2(%arg0: i32) -> (i32, i32) {
    %c0_i32 = arith.constant 0 : i32
    %c0_i32_0 = arith.constant 0 : i32
    %c0_i32_1 = arith.constant 0 : i32
    return %c0_i32, %c0_i32_0 : i32, i32
  }
  func.func @transform_3(%arg0: i32) -> (i32, i32, i32) {
    %c0_i32 = arith.constant 0 : i32
    %c0_i32_0 = arith.constant 0 : i32
    %c0_i32_1 = arith.constant 0 : i32
    return %arg0, %c0_i32, %c0_i32_0 : i32, i32, i32
  }
}

</mosaic_0001>

<llo_original>
// kernel: tpu_custom_call.1
$region0: #{tpu_custom_call.1}
  #allocation0 [shape = 'u32[]', space=smem, size = 0x4, offset = 0x4, fixed_abs, tag = 'smem constant byte address 0x4 - core index']
  #allocation1 [shape = 'u32[72,128]{1,0:T(1,128)}', space=vmem, size = 0x9000, scoped, tag = 'internal scratch']
  %s0 = inlined_call_operand.vmem [shape: f32[2,36,256], index: 0, kind: input, shape index: {}]
  %s1 = inlined_call_operand.vmem [shape: f32[8,36], index: 1, kind: input, shape index: {}]
  %s2 = inlined_call_operand.vmem [shape: f32[8,1], index: 2, kind: input, shape index: {}]
  %s3 = inlined_call_operand.hbm [shape: f32[2,8,256], index: 3, kind: output, shape index: {}]
  %s4 = sld [smem:[#allocation0]]
  $region45: #{tpu_custom_call.1} parent=0
    _
  %s6 = ssub.s32 1, %s4
  %s7 = scalar_select 0, %s6, %s4
  $region1: #{tpu_custom_call.1} parent=0
    #allocation2 [shape = 'u8[16384]{0}', space=vmem, size = 0x4000, scoped, tag = 'output window, operand 0']
    #allocation3 [shape = 's32[2]{0}', space=sflag, size = 0x8, scoped, tag = 'scoped memory for tpu_custom_call.1']
    %8 = vsyncpa [#allocation3], 0
    %s9 = scalar_lea.sflag [#allocation3], 1
    %10 = vsyncpa %s9, 0
    loop: start=0, step=1, limit=4
    $region2: #{tpu_custom_call.1} parent=1 // loop_pre_header
      _
    $region3: #{tpu_custom_call.1} parent=1 // loop_header
      %s12 = sphi 0, %s16
      %p13 = scmp.ge.s32.totalorder %s12, 4
      %s22 = sphi 0, %s24
      %s25 = sphi 0, %s22
      %s26 = sphi 0, %s25
      %s42 = sphi 0, %s26
      %s46 = sphi 0, %s46
      %s48 = sphi 0, %s46
      %s49 = sphi 0, %s48
      %s63 = sphi 0, %s49
      %s67 = sphi 0, %s67
      %s69 = sphi 0, %s67
      %s70 = sphi 0, %s69
      %s84 = sphi 0, %s70
      %s90 = sphi 0, %s92
      %s93 = sphi 0, %s90
      %s94 = sphi 0, %s93
      %s110 = sphi 0, %s94
    $region4: #{tpu_custom_call.1} parent=1 // loop_header_branch
      %15 = sbr.rel (%p13) target = $region8
    $region5: #{tpu_custom_call.1} parent=1 // loop_body
      %s17 = ssub.s32 %s12, 1
      %s18 = ssub.s32 %s12, 2
      %s19 = sadd.s32 %s12, 1
      %s20 = ssub.s32 %s12, %s19
      %p21 = scmp.eq.s32.totalorder %s20, 0
      %s23 = sadd.s32 %s22, 1
      %s24 = scalar_select %p21, %s22, %s23
      %p27 = pneg %p21
      %p28 = scmp.eq.s32.totalorder %s12, 1
      %p29 = por %p27, %p28
      %p30 = scmp.ne.s32.totalorder %s22, %s25
      %p31 = scmp.eq.s32.totalorder %s12, 0
      %p32 = por %p30, %p31
      %p33 = scmp.ne.s32.totalorder %s22, %s25
      %p34 = scmp.eq.s32.totalorder %s17, 1
      %p35 = por %p33, %p34
      %p36 = scmp.ne.s32.totalorder %s25, %s26
      %p37 = scmp.eq.s32.totalorder %s17, 0
      %p38 = por %p36, %p37
      %p39 = scmp.ne.s32.totalorder %s25, %s26
      %p40 = scmp.eq.s32.totalorder %s18, 1
      %p41 = por %p39, %p40
      %p43 = scmp.ne.s32.totalorder %s26, %s42
      %p44 = scmp.eq.s32.totalorder %s18, 0
      %p45 = por %p43, %p44
      %s47 = sadd.s32 %s46, 1
      %p50 = scmp.eq.s32.totalorder %s12, 1
      %p51 = scmp.ne.s32.totalorder %s46, %s48
      %p52 = scmp.eq.s32.totalorder %s12, 0
      %p53 = por %p51, %p52
      %p54 = scmp.ne.s32.totalorder %s46, %s48
      %p55 = scmp.eq.s32.totalorder %s17, 1
      %p56 = por %p54, %p55
      %p57 = scmp.ne.s32.totalorder %s48, %s49
      %p58 = scmp.eq.s32.totalorder %s17, 0
      %p59 = por %p57, %p58
      %p60 = scmp.ne.s32.totalorder %s48, %s49
      %p61 = scmp.eq.s32.totalorder %s18, 1
      %p62 = por %p60, %p61
      %p64 = scmp.ne.s32.totalorder %s49, %s63
      %p65 = scmp.eq.s32.totalorder %s18, 0
      %p66 = por %p64, %p65
      %s68 = sadd.s32 %s67, 1
      %p71 = scmp.eq.s32.totalorder %s12, 1
      %p72 = scmp.ne.s32.totalorder %s67, %s69
      %p73 = scmp.eq.s32.totalorder %s12, 0
      %p74 = por %p72, %p73
      %p75 = scmp.ne.s32.totalorder %s67, %s69
      %p76 = scmp.eq.s32.totalorder %s17, 1
      %p77 = por %p75, %p76
      %p78 = scmp.ne.s32.totalorder %s69, %s70
      %p79 = scmp.eq.s32.totalorder %s17, 0
      %p80 = por %p78, %p79
      %p81 = scmp.ne.s32.totalorder %s69, %s70
      %p82 = scmp.eq.s32.totalorder %s18, 1
      %p83 = por %p81, %p82
      %p85 = scmp.ne.s32.totalorder %s70, %s84
      %p86 = scmp.eq.s32.totalorder %s18, 0
      %p87 = por %p85, %p86
      %s88 = ssub.s32 %s12, %s19
      %p89 = scmp.eq.s32.totalorder %s88, 0
      %s91 = sadd.s32 %s90, 1
      %s92 = scalar_select %p89, %s90, %s91
      %p95 = pneg %p89
      %p96 = scmp.eq.s32.totalorder %s12, 1
      %p97 = por %p95, %p96
      %p98 = scmp.ne.s32.totalorder %s90, %s93
      %p99 = scmp.eq.s32.totalorder %s12, 0
      %p100 = por %p98, %p99
      %p101 = scmp.ne.s32.totalorder %s90, %s93
      %p102 = scmp.eq.s32.totalorder %s17, 1
      %p103 = por %p101, %p102
      %p104 = scmp.ne.s32.totalorder %s93, %s94
      %p105 = scmp.eq.s32.totalorder %s17, 0
      %p106 = por %p104, %p105
      %p107 = scmp.ne.s32.totalorder %s93, %s94
      %p108 = scmp.eq.s32.totalorder %s18, 1
      %p109 = por %p107, %p108
      %p111 = scmp.ne.s32.totalorder %s94, %s110
      %p112 = scmp.eq.s32.totalorder %s18, 0
      %p113 = por %p111, %p112
      %p114 = scmp.le.s32.totalorder 1, %s12
      %p115 = scmp.lt.s32.totalorder %s12, 3
      %p116 = pnand %p114, %p115
      %p117 = pneg %p116
      // Predicated region
      $region9: #{tpu_custom_call.1} parent=5 // pred_check
        _
      $region10: #{tpu_custom_call.1} parent=5 // pred_check_branch
        %119 = sbr.rel (%p116) target = $region12
      $region11: #{tpu_custom_call.1} parent=5 // pred_region
        %s120 = ssub.s32 %s12, 1
        // Predicated region
        $region13: #{tpu_custom_call.1} parent=11 // pred_check
          %p121 = pneg %p59
        $region14: #{tpu_custom_call.1} parent=11 // pred_check_branch
          %123 = sbr.rel (%p121) target = $region16
        $region15: #{tpu_custom_call.1} parent=11 // pred_region
          _
        $region16: #{tpu_custom_call.1} parent=11 // pred_fallthru
          _
        // Predicated region
        $region17: #{tpu_custom_call.1} parent=11 // pred_check
          %p124 = pneg %p80
        $region18: #{tpu_custom_call.1} parent=11 // pred_check_branch
          %126 = sbr.rel (%p124) target = $region20
        $region19: #{tpu_custom_call.1} parent=11 // pred_region
          _
        $region20: #{tpu_custom_call.1} parent=11 // pred_fallthru
          _
      $region12: #{tpu_custom_call.1} parent=5 // pred_fallthru
        _
      %p127 = scmp.lt.s32.totalorder %s12, 2
      // Predicated region
      $region21: #{tpu_custom_call.1} parent=5 // pred_check
        %p128 = pneg %p127
      $region22: #{tpu_custom_call.1} parent=5 // pred_check_branch
        %130 = sbr.rel (%p128) target = $region24
      $region23: #{tpu_custom_call.1} parent=5 // pred_region
        // Predicated region
        $region25: #{tpu_custom_call.1} parent=23 // pred_check
          %p131 = pneg %p32
        $region26: #{tpu_custom_call.1} parent=23 // pred_check_branch
          %133 = sbr.rel (%p131) target = $region28
        $region27: #{tpu_custom_call.1} parent=23 // pred_region
          %p134 = scmp.lt.s32.totalorder %s12, 1
          %s135 = scalar_select %p134, %s12, 1
          %s136 = smul.addr %s135, 10
          %s137 = smul.addr %s136, 8
          %s138 = scalar_lea.vmem %s0, %s137
        $region28: #{tpu_custom_call.1} parent=23 // pred_fallthru
          _
      $region24: #{tpu_custom_call.1} parent=5 // pred_fallthru
        _
      %p139 = scmp.le.s32.totalorder 1, %s12
      %p140 = scmp.lt.s32.totalorder %s12, 3
      %p141 = pnand %p139, %p140
      %p142 = pneg %p141
      // Predicated region
      $region29: #{tpu_custom_call.1} parent=5 // pred_check
        _
      $region30: #{tpu_custom_call.1} parent=5 // pred_check_branch
        %144 = sbr.rel (%p141) target = $region32
      $region31: #{tpu_custom_call.1} parent=5 // pred_region
        %s145 = ssub.s32 %s12, 1
        %p146 = scmp.lt.s32.totalorder %s17, 1
        %s147 = scalar_select %p146, %s17, 1
        %s148 = smul.addr %s147, 10
        %s149 = smul.addr %s148, 8
        %s150 = scalar_lea.vmem %s0, %s149
        %p151 = pneg %p38
        %p152 = pneg %p35
        %p153 = pneg %p59
        %p154 = pneg %p56
        %p155 = pneg %p80
        %p156 = pneg %p77
        %p157 = pneg %p106
        %p158 = pneg %p103
        %s159 = sand.u32 %s93, 1
        %s160 = scalar_lea.sflag [#allocation3], %s159
        %s161 = sand.u32 %s93, 1
        %s162 = smul.addr %s161, 16
        %s163 = scalar_lea.vmem [#allocation2], %s162
        %p164 = scmp.lt.s32.totalorder %s17, 1
        %s165 = scalar_select %p164, %s17, 1
        %s166 = smul.addr %s165, 10
        %s167 = smul.addr %s166, 8
        %s168 = scalar_lea.vmem %s0, %s167
        %v169 = vld [vmem:[%s1] sm:$0xff]
        %v170 = vld [vmem:[%s2] sm:$0xff]
        %v171 = vld [vmem:[%s168] sm:$0xff]
        %v172 = vld [vmem:[%s168 + $0x8] sm:$0xff]
        %v173 = vld [vmem:[%s168 + $0x10] sm:$0xff]
        %v174 = vld [vmem:[%s168 + $0x18] sm:$0xff]
        %v175 = vld [vmem:[%s168 + $0x20] sm:$0xff]
        %v176 = vld [vmem:[%s168 + $0x28] sm:$0xff]
        %v177 = vld [vmem:[%s168 + $0x30] sm:$0xff]
        %v178 = vld [vmem:[%s168 + $0x38] sm:$0xff]
        %v179 = vld [vmem:[%s168 + $0x40] sm:$0xf]
        %v180 = vld [vmem:[%s168 + $0x48] sm:$0xf]
        %182 = vset.pattern.permute.xlu0 0
        %183 = vperm.xlu0 %182, %v170
        %v184 = vpop.permute.xlu0 %183
        %vm186 = vcmask 293888
        %v188 = vsel %vm186, %v169, 0
        %vm190 = vcmask 1043456
        %v192 = vsel %vm190, %v179, 0
        %v195 = vsel %vm190, %v180, 0
        %197 = vmatpush.msra.mxu0 0.0
        %198 = vmatpush.msra.mxu0 0.0
        %199 = vmatpush.msra.mxu0 0.0
        %200 = vmatpush.msra.mxu0 0.0
        %201 = vmatpush.msra.mxu0 0.0
        %202 = vmatpush.msra.mxu0 0.0
        %203 = vmatpush.msra.mxu0 0.0
        %204 = vmatpush.msra.mxu0 0.0
        %205 = vmatpush.msra.mxu0 0.0
        %206 = vmatpush.msra.mxu0 0.0
        %207 = vmatpush.msra.mxu0 0.0
        %v208 = vand.u32 %v192, 4294901760
        %209 = vmatpush.msra.mxu0 %v208
        %v210 = vand.u32 %v177, 4294901760
        %211 = vmatpush.msra.mxu0 %v210
        %v212 = vand.u32 %v175, 4294901760
        %213 = vmatpush.msra.mxu0 %v212
        %v214 = vand.u32 %v173, 4294901760
        %215 = vmatpush.msra.mxu0 %v214
        %v216 = vand.u32 %v171, 4294901760
        %217 = vmatpush.msra.mxu0 %v216
        %v218 = vand.u32 %v188, 4294901760
        %v219 = vsub.f32 %v188, %v218
        %v220 = vand.u32 %v219, 4294901760
        %v221 = vsub.f32 %v219, %v220
        %v222 = vand.u32 %v221, 4294901760
        %223 = vmatmul.f32.gmra.mxu0 %v222
        %v224 = vpop.f32.mrf.mxu0
        %v225 = vadd.f32 %v184, %v224
        %226 = vdwg.mxu0
        %227 = vmatpush.msra.mxu0 0.0
        %228 = vmatpush.msra.mxu0 0.0
        %229 = vmatpush.msra.mxu0 0.0
        %230 = vmatpush.msra.mxu0 0.0
        %231 = vmatpush.msra.mxu0 0.0
        %232 = vmatpush.msra.mxu0 0.0
        %233 = vmatpush.msra.mxu0 0.0
        %234 = vmatpush.msra.mxu0 0.0
        %235 = vmatpush.msra.mxu0 0.0
        %236 = vmatpush.msra.mxu0 0.0
        %237 = vmatpush.msra.mxu0 0.0
        %v238 = vand.u32 %v192, 4294901760
        %v239 = vsub.f32 %v192, %v238
        %v240 = vand.u32 %v239, 4294901760
        %v241 = vsub.f32 %v239, %v240
        %v242 = vand.u32 %v241, 4294901760
        %243 = vmatpush.msra.mxu0 %v242
        %v244 = vand.u32 %v177, 4294901760
        %v245 = vsub.f32 %v177, %v244
        %v246 = vand.u32 %v245, 4294901760
        %v247 = vsub.f32 %v245, %v246
        %v248 = vand.u32 %v247, 4294901760
        %249 = vmatpush.msra.mxu0 %v248
        %v250 = vand.u32 %v175, 4294901760
        %v251 = vsub.f32 %v175, %v250
        %v252 = vand.u32 %v251, 4294901760
        %v253 = vsub.f32 %v251, %v252
        %v254 = vand.u32 %v253, 4294901760
        %255 = vmatpush.msra.mxu0 %v254
        %v256 = vand.u32 %v173, 4294901760
        %v257 = vsub.f32 %v173, %v256
        %v258 = vand.u32 %v257, 4294901760
        %v259 = vsub.f32 %v257, %v258
        %v260 = vand.u32 %v259, 4294901760
        %261 = vmatpush.msra.mxu0 %v260
        %v262 = vand.u32 %v171, 4294901760
        %v263 = vsub.f32 %v171, %v262
        %v264 = vand.u32 %v263, 4294901760
        %v265 = vsub.f32 %v263, %v264
        %v266 = vand.u32 %v265, 4294901760
        %267 = vmatpush.msra.mxu0 %v266
        %v268 = vand.u32 %v188, 4294901760
        %269 = vmatmul.f32.gmra.mxu0 %v268
        %v270 = vpop.f32.mrf.mxu0
        %v271 = vadd.f32 %v225, %v270
        %272 = vdwg.mxu0
        %273 = vmatpush.msra.mxu0 0.0
        %274 = vmatpush.msra.mxu0 0.0
        %275 = vmatpush.msra.mxu0 0.0
        %276 = vmatpush.msra.mxu0 0.0
        %277 = vmatpush.msra.mxu0 0.0
        %278 = vmatpush.msra.mxu0 0.0
        %279 = vmatpush.msra.mxu0 0.0
        %280 = vmatpush.msra.mxu0 0.0
        %281 = vmatpush.msra.mxu0 0.0
        %282 = vmatpush.msra.mxu0 0.0
        %283 = vmatpush.msra.mxu0 0.0
        %v284 = vand.u32 %v192, 4294901760
        %v285 = vsub.f32 %v192, %v284
        %286 = vmatpush.msra.mxu0 %v285
        %v287 = vand.u32 %v177, 4294901760
        %v288 = vsub.f32 %v177, %v287
        %289 = vmatpush.msra.mxu0 %v288
        %v290 = vand.u32 %v175, 4294901760
        %v291 = vsub.f32 %v175, %v290
        %292 = vmatpush.msra.mxu0 %v291
        %v293 = vand.u32 %v173, 4294901760
        %v294 = vsub.f32 %v173, %v293
        %295 = vmatpush.msra.mxu0 %v294
        %v296 = vand.u32 %v171, 4294901760
        %v297 = vsub.f32 %v171, %v296
        %298 = vmatpush.msra.mxu0 %v297
        %v299 = vand.u32 %v188, 4294901760
        %v300 = vsub.f32 %v188, %v299
        %301 = vmatmul.f32.gmra.mxu0 %v300
        %v302 = vpop.f32.mrf.mxu0
        %v303 = vadd.f32 %v271, %v302
        %304 = vdwg.mxu0
        %305 = vmatpush.msra.mxu0 0.0
        %306 = vmatpush.msra.mxu0 0.0
        %307 = vmatpush.msra.mxu0 0.0
        %308 = vmatpush.msra.mxu0 0.0
        %309 = vmatpush.msra.mxu0 0.0
        %310 = vmatpush.msra.mxu0 0.0
        %311 = vmatpush.msra.mxu0 0.0
        %312 = vmatpush.msra.mxu0 0.0
        %313 = vmatpush.msra.mxu0 0.0
        %314 = vmatpush.msra.mxu0 0.0
        %315 = vmatpush.msra.mxu0 0.0
        %v316 = vand.u32 %v192, 4294901760
        %317 = vmatpush.msra.mxu0 %v316
        %v318 = vand.u32 %v177, 4294901760
        %319 = vmatpush.msra.mxu0 %v318
        %v320 = vand.u32 %v175, 4294901760
        %321 = vmatpush.msra.mxu0 %v320
        %v322 = vand.u32 %v173, 4294901760
        %323 = vmatpush.msra.mxu0 %v322
        %v324 = vand.u32 %v171, 4294901760
        %325 = vmatpush.msra.mxu0 %v324
        %v326 = vand.u32 %v188, 4294901760
        %v327 = vsub.f32 %v188, %v326
        %v328 = vand.u32 %v327, 4294901760
        %329 = vmatmul.f32.gmra.mxu0 %v328
        %v330 = vpop.f32.mrf.mxu0
        %v331 = vadd.f32 %v303, %v330
        %332 = vdwg.mxu0
        %333 = vmatpush.msra.mxu0 0.0
        %334 = vmatpush.msra.mxu0 0.0
        %335 = vmatpush.msra.mxu0 0.0
        %336 = vmatpush.msra.mxu0 0.0
        %337 = vmatpush.msra.mxu0 0.0
        %338 = vmatpush.msra.mxu0 0.0
        %339 = vmatpush.msra.mxu0 0.0
        %340 = vmatpush.msra.mxu0 0.0
        %341 = vmatpush.msra.mxu0 0.0
        %342 = vmatpush.msra.mxu0 0.0
        %343 = vmatpush.msra.mxu0 0.0
        %v344 = vand.u32 %v192, 4294901760
        %v345 = vsub.f32 %v192, %v344
        %v346 = vand.u32 %v345, 4294901760
        %347 = vmatpush.msra.mxu0 %v346
        %v348 = vand.u32 %v177, 4294901760
        %v349 = vsub.f32 %v177, %v348
        %v350 = vand.u32 %v349, 4294901760
        %351 = vmatpush.msra.mxu0 %v350
        %v352 = vand.u32 %v175, 4294901760
        %v353 = vsub.f32 %v175, %v352
        %v354 = vand.u32 %v353, 4294901760
        %355 = vmatpush.msra.mxu0 %v354
        %v356 = vand.u32 %v173, 4294901760
        %v357 = vsub.f32 %v173, %v356
        %v358 = vand.u32 %v357, 4294901760
        %359 = vmatpush.msra.mxu0 %v358
        %v360 = vand.u32 %v171, 4294901760
        %v361 = vsub.f32 %v171, %v360
        %v362 = vand.u32 %v361, 4294901760
        %363 = vmatpush.msra.mxu0 %v362
        %v364 = vand.u32 %v188, 4294901760
        %365 = vmatmul.f32.gmra.mxu0 %v364
        %v366 = vpop.f32.mrf.mxu0
        %v367 = vadd.f32 %v331, %v366
        %368 = vdwg.mxu0
        %369 = vmatpush.msra.mxu0 0.0
        %370 = vmatpush.msra.mxu0 0.0
        %371 = vmatpush.msra.mxu0 0.0
        %372 = vmatpush.msra.mxu0 0.0
        %373 = vmatpush.msra.mxu0 0.0
        %374 = vmatpush.msra.mxu0 0.0
        %375 = vmatpush.msra.mxu0 0.0
        %376 = vmatpush.msra.mxu0 0.0
        %377 = vmatpush.msra.mxu0 0.0
        %378 = vmatpush.msra.mxu0 0.0
        %379 = vmatpush.msra.mxu0 0.0
        %v380 = vand.u32 %v192, 4294901760
        %381 = vmatpush.msra.mxu0 %v380
        %v382 = vand.u32 %v177, 4294901760
        %383 = vmatpush.msra.mxu0 %v382
        %v384 = vand.u32 %v175, 4294901760
        %385 = vmatpush.msra.mxu0 %v384
        %v386 = vand.u32 %v173, 4294901760
        %387 = vmatpush.msra.mxu0 %v386
        %v388 = vand.u32 %v171, 4294901760
        %389 = vmatpush.msra.mxu0 %v388
        %v390 = vand.u32 %v188, 4294901760
        %391 = vmatmul.f32.gmra.mxu0 %v390
        %v392 = vpop.f32.mrf.mxu0
        %v393 = vadd.f32 %v367, %v392
        %394 = vdwg.mxu0
        %395 = vmatpush.msra.mxu0 0.0
        %396 = vmatpush.msra.mxu0 0.0
        %397 = vmatpush.msra.mxu0 0.0
        %398 = vmatpush.msra.mxu0 0.0
        %399 = vmatpush.msra.mxu0 0.0
        %400 = vmatpush.msra.mxu0 0.0
        %401 = vmatpush.msra.mxu0 0.0
        %402 = vmatpush.msra.mxu0 0.0
        %403 = vmatpush.msra.mxu0 0.0
        %404 = vmatpush.msra.mxu0 0.0
        %405 = vmatpush.msra.mxu0 0.0
        %v406 = vand.u32 %v195, 4294901760
        %407 = vmatpush.msra.mxu0 %v406
        %v408 = vand.u32 %v178, 4294901760
        %409 = vmatpush.msra.mxu0 %v408
        %v410 = vand.u32 %v176, 4294901760
        %411 = vmatpush.msra.mxu0 %v410
        %v412 = vand.u32 %v174, 4294901760
        %413 = vmatpush.msra.mxu0 %v412
        %v414 = vand.u32 %v172, 4294901760
        %415 = vmatpush.msra.mxu0 %v414
        %v416 = vand.u32 %v188, 4294901760
        %v417 = vsub.f32 %v188, %v416
        %v418 = vand.u32 %v417, 4294901760
        %v419 = vsub.f32 %v417, %v418
        %v420 = vand.u32 %v419, 4294901760
        %421 = vmatmul.f32.gmra.mxu0 %v420
        %v422 = vpop.f32.mrf.mxu0
        %v423 = vadd.f32 %v184, %v422
        %424 = vdwg.mxu0
        %425 = vmatpush.msra.mxu0 0.0
        %426 = vmatpush.msra.mxu0 0.0
        %427 = vmatpush.msra.mxu0 0.0
        %428 = vmatpush.msra.mxu0 0.0
        %429 = vmatpush.msra.mxu0 0.0
        %430 = vmatpush.msra.mxu0 0.0
        %431 = vmatpush.msra.mxu0 0.0
        %432 = vmatpush.msra.mxu0 0.0
        %433 = vmatpush.msra.mxu0 0.0
        %434 = vmatpush.msra.mxu0 0.0
        %435 = vmatpush.msra.mxu0 0.0
        %v436 = vand.u32 %v195, 4294901760
        %v437 = vsub.f32 %v195, %v436
        %v438 = vand.u32 %v437, 4294901760
        %v439 = vsub.f32 %v437, %v438
        %v440 = vand.u32 %v439, 4294901760
        %441 = vmatpush.msra.mxu0 %v440
        %v442 = vand.u32 %v178, 4294901760
        %v443 = vsub.f32 %v178, %v442
        %v444 = vand.u32 %v443, 4294901760
        %v445 = vsub.f32 %v443, %v444
        %v446 = vand.u32 %v445, 4294901760
        %447 = vmatpush.msra.mxu0 %v446
        %v448 = vand.u32 %v176, 4294901760
        %v449 = vsub.f32 %v176, %v448
        %v450 = vand.u32 %v449, 4294901760
        %v451 = vsub.f32 %v449, %v450
        %v452 = vand.u32 %v451, 4294901760
        %453 = vmatpush.msra.mxu0 %v452
        %v454 = vand.u32 %v174, 4294901760
        %v455 = vsub.f32 %v174, %v454
        %v456 = vand.u32 %v455, 4294901760
        %v457 = vsub.f32 %v455, %v456
        %v458 = vand.u32 %v457, 4294901760
        %459 = vmatpush.msra.mxu0 %v458
        %v460 = vand.u32 %v172, 4294901760
        %v461 = vsub.f32 %v172, %v460
        %v462 = vand.u32 %v461, 4294901760
        %v463 = vsub.f32 %v461, %v462
        %v464 = vand.u32 %v463, 4294901760
        %465 = vmatpush.msra.mxu0 %v464
        %v466 = vand.u32 %v188, 4294901760
        %467 = vmatmul.f32.gmra.mxu0 %v466
        %v468 = vpop.f32.mrf.mxu0
        %v469 = vadd.f32 %v423, %v468
        %470 = vdwg.mxu0
        %471 = vmatpush.msra.mxu0 0.0
        %472 = vmatpush.msra.mxu0 0.0
        %473 = vmatpush.msra.mxu0 0.0
        %474 = vmatpush.msra.mxu0 0.0
        %475 = vmatpush.msra.mxu0 0.0
        %476 = vmatpush.msra.mxu0 0.0
        %477 = vmatpush.msra.mxu0 0.0
        %478 = vmatpush.msra.mxu0 0.0
        %479 = vmatpush.msra.mxu0 0.0
        %480 = vmatpush.msra.mxu0 0.0
        %481 = vmatpush.msra.mxu0 0.0
        %v482 = vand.u32 %v195, 4294901760
        %v483 = vsub.f32 %v195, %v482
        %484 = vmatpush.msra.mxu0 %v483
        %v485 = vand.u32 %v178, 4294901760
        %v486 = vsub.f32 %v178, %v485
        %487 = vmatpush.msra.mxu0 %v486
        %v488 = vand.u32 %v176, 4294901760
        %v489 = vsub.f32 %v176, %v488
        %490 = vmatpush.msra.mxu0 %v489
        %v491 = vand.u32 %v174, 4294901760
        %v492 = vsub.f32 %v174, %v491
        %493 = vmatpush.msra.mxu0 %v492
        %v494 = vand.u32 %v172, 4294901760
        %v495 = vsub.f32 %v172, %v494
        %496 = vmatpush.msra.mxu0 %v495
        %v497 = vand.u32 %v188, 4294901760
        %v498 = vsub.f32 %v188, %v497
        %499 = vmatmul.f32.gmra.mxu0 %v498
        %v500 = vpop.f32.mrf.mxu0
        %v501 = vadd.f32 %v469, %v500
        %502 = vdwg.mxu0
        %503 = vmatpush.msra.mxu0 0.0
        %504 = vmatpush.msra.mxu0 0.0
        %505 = vmatpush.msra.mxu0 0.0
        %506 = vmatpush.msra.mxu0 0.0
        %507 = vmatpush.msra.mxu0 0.0
        %508 = vmatpush.msra.mxu0 0.0
        %509 = vmatpush.msra.mxu0 0.0
        %510 = vmatpush.msra.mxu0 0.0
        %511 = vmatpush.msra.mxu0 0.0
        %512 = vmatpush.msra.mxu0 0.0
        %513 = vmatpush.msra.mxu0 0.0
        %v514 = vand.u32 %v195, 4294901760
        %515 = vmatpush.msra.mxu0 %v514
        %v516 = vand.u32 %v178, 4294901760
        %517 = vmatpush.msra.mxu0 %v516
        %v518 = vand.u32 %v176, 4294901760
        %519 = vmatpush.msra.mxu0 %v518
        %v520 = vand.u32 %v174, 4294901760
        %521 = vmatpush.msra.mxu0 %v520
        %v522 = vand.u32 %v172, 4294901760
        %523 = vmatpush.msra.mxu0 %v522
        %v524 = vand.u32 %v188, 4294901760
        %v525 = vsub.f32 %v188, %v524
        %v526 = vand.u32 %v525, 4294901760
        %527 = vmatmul.f32.gmra.mxu0 %v526
        %v528 = vpop.f32.mrf.mxu0
        %v529 = vadd.f32 %v501, %v528
        %530 = vdwg.mxu0
        %531 = vmatpush.msra.mxu0 0.0
        %532 = vmatpush.msra.mxu0 0.0
        %533 = vmatpush.msra.mxu0 0.0
        %534 = vmatpush.msra.mxu0 0.0
        %535 = vmatpush.msra.mxu0 0.0
        %536 = vmatpush.msra.mxu0 0.0
        %537 = vmatpush.msra.mxu0 0.0
        %538 = vmatpush.msra.mxu0 0.0
        %539 = vmatpush.msra.mxu0 0.0
        %540 = vmatpush.msra.mxu0 0.0
        %541 = vmatpush.msra.mxu0 0.0
        %v542 = vand.u32 %v195, 4294901760
        %v543 = vsub.f32 %v195, %v542
        %v544 = vand.u32 %v543, 4294901760
        %545 = vmatpush.msra.mxu0 %v544
        %v546 = vand.u32 %v178, 4294901760
        %v547 = vsub.f32 %v178, %v546
        %v548 = vand.u32 %v547, 4294901760
        %549 = vmatpush.msra.mxu0 %v548
        %v550 = vand.u32 %v176, 4294901760
        %v551 = vsub.f32 %v176, %v550
        %v552 = vand.u32 %v551, 4294901760
        %553 = vmatpush.msra.mxu0 %v552
        %v554 = vand.u32 %v174, 4294901760
        %v555 = vsub.f32 %v174, %v554
        %v556 = vand.u32 %v555, 4294901760
        %557 = vmatpush.msra.mxu0 %v556
        %v558 = vand.u32 %v172, 4294901760
        %v559 = vsub.f32 %v172, %v558
        %v560 = vand.u32 %v559, 4294901760
        %561 = vmatpush.msra.mxu0 %v560
        %v562 = vand.u32 %v188, 4294901760
        %563 = vmatmul.f32.gmra.mxu0 %v562
        %v564 = vpop.f32.mrf.mxu0
        %v565 = vadd.f32 %v529, %v564
        %566 = vdwg.mxu0
        %567 = vmatpush.msra.mxu0 0.0
        %568 = vmatpush.msra.mxu0 0.0
        %569 = vmatpush.msra.mxu0 0.0
        %570 = vmatpush.msra.mxu0 0.0
        %571 = vmatpush.msra.mxu0 0.0
        %572 = vmatpush.msra.mxu0 0.0
        %573 = vmatpush.msra.mxu0 0.0
        %574 = vmatpush.msra.mxu0 0.0
        %575 = vmatpush.msra.mxu0 0.0
        %576 = vmatpush.msra.mxu0 0.0
        %577 = vmatpush.msra.mxu0 0.0
        %v578 = vand.u32 %v195, 4294901760
        %579 = vmatpush.msra.mxu0 %v578
        %v580 = vand.u32 %v178, 4294901760
        %581 = vmatpush.msra.mxu0 %v580
        %v582 = vand.u32 %v176, 4294901760
        %583 = vmatpush.msra.mxu0 %v582
        %v584 = vand.u32 %v174, 4294901760
        %585 = vmatpush.msra.mxu0 %v584
        %v586 = vand.u32 %v172, 4294901760
        %587 = vmatpush.msra.mxu0 %v586
        %v588 = vand.u32 %v188, 4294901760
        %589 = vmatmul.f32.gmra.mxu0 %v588
        %v590 = vpop.f32.mrf.mxu0
        %v591 = vadd.f32 %v565, %v590
        %592 = vdwg.mxu0
        %593 = vst [vmem:[%s163] sm:$0xff] %v393
        %594 = vst [vmem:[%s163 + $0x8] sm:$0xff] %v591
        %s595 = sand.u32 %s93, 1
        %s596 = scalar_lea.sflag [#allocation3], %s595
        %s597 = sand.u32 %s93, 1
        %s598 = smul.addr %s597, 16
        %s599 = scalar_lea.vmem [#allocation2], %s598
        // Predicated region
        $region33: #{tpu_custom_call.1} parent=31 // pred_check
          %p600 = pneg %p103
        $region34: #{tpu_custom_call.1} parent=31 // pred_check_branch
          %602 = sbr.rel (%p600) target = $region36
        $region35: #{tpu_custom_call.1} parent=31 // pred_region
          %604 = vsyncadd %s596, 0
          %s605 = smul.addr %s17, 2
          %s606 = smul.addr %s605, 8
          %s607 = scalar_lea.hbm %s3, %s606
          %s609 = sshll.u32 %s599, 4
          %s610 = int_to_ptr.vmem [resolvable:$true] %s609
          %s611 = sshll.u32 %s607, 4
          %s612 = int_to_ptr.hbm [resolvable:$true] %s611
          %614 = dma.vmem_to_hbm [thread:$0]  %s610, 256, %s612, %s596
        $region36: #{tpu_custom_call.1} parent=31 // pred_fallthru
          _
      $region32: #{tpu_custom_call.1} parent=5 // pred_fallthru
        _
      %p615 = scmp.le.s32.totalorder 2, %s12
      // Predicated region
      $region37: #{tpu_custom_call.1} parent=5 // pred_check
        %p616 = pneg %p615
      $region38: #{tpu_custom_call.1} parent=5 // pred_check_branch
        %618 = sbr.rel (%p616) target = $region40
      $region39: #{tpu_custom_call.1} parent=5 // pred_region
        %s619 = ssub.s32 %s12, 2
        // Predicated region
        $region41: #{tpu_custom_call.1} parent=39 // pred_check
          %p620 = pneg %p109
        $region42: #{tpu_custom_call.1} parent=39 // pred_check_branch
          %622 = sbr.rel (%p620) target = $region44
        $region43: #{tpu_custom_call.1} parent=39 // pred_region
          %s623 = sand.u32 %s94, 1
          %s624 = scalar_lea.sflag [#allocation3], %s623
          %s625 = sand.u32 %s94, 1
          %s626 = smul.addr %s625, 16
          %s627 = scalar_lea.vmem [#allocation2], %s626
          %629 = dma.done %s624, 256
        $region44: #{tpu_custom_call.1} parent=39 // pred_fallthru
          _
      $region40: #{tpu_custom_call.1} parent=5 // pred_fallthru
        _
    $region6: #{tpu_custom_call.1} parent=1 // loop_footer
      %s16 = sadd.s32 1, %s12
    $region7: #{tpu_custom_call.1} parent=1 // loop_footer_branch
      %11 = sbr.rel target = $region3
    $region8: #{tpu_custom_call.1} parent=1 // loop_exit
      _
    %630 = vsyncpa [#allocation3], 1
    %s631 = scalar_lea.sflag [#allocation3], 1
    %632 = vsyncpa %s631, 1

</llo_original>
